<compile_context>
chip_gen: v5e
topology: v5e:2x2
jax: 0.10.0
libtpu: 0.0.40
codegen_flags: <defaults>
</compile_context>

<pallas_src>
import functools

import jax
import jax.numpy as jnp
from jax.experimental import pallas as pl
from jax.experimental.pallas import tpu as pltpu

# ----------------------------------------------------------------------------
# Hyper-parameters of the synthetic Net (small, TPU-friendly sizes).
# ----------------------------------------------------------------------------
BATCH = 8
C, H, W = 1, 16, 16            # input "image" shape (NCHW)
NUM_INPUTS = C * H * W         # 256
NUM_HIDDENS1 = 256
NUM_HIDDENS2 = 128
NUM_OUTPUTS = 16
OUT_PAD = 128                  # lane-dense padded width of the final layer

DROPOUT1 = 0.2                 # globals referenced by the PyTorch module
DROPOUT2 = 0.5
IS_TRAINING = True
NOISE_STD = 0.01

MAX_BLOCK_ROWS = 512           # batch tile; weights stay resident across tiles


def _round_up(x, m):
    return ((x + m - 1) // m) * m


# ----------------------------------------------------------------------------
# Fused MLP kernel:
#   h1 = relu(x @ W1 + b1) + noise1 ; h1 *= scaled_mask1   (training)
#   h2 = relu(h1 @ W2 + b2) + noise2 ; h2 *= scaled_mask2  (training)
#   out = h2 @ W3_pad + b3_pad      (128-lane padded output)
# Weights are stored bf16 (halves HBM traffic) and cast to f32 in-kernel so
# the math stays in f32 like the PyTorch reference.
# ----------------------------------------------------------------------------
def mlp_kernel(x_ref, w1_ref, b1_ref, w2_ref, b2_ref, w3_ref, b3_ref,
               n1_ref, n2_ref, m1_ref, m2_ref, o_ref, *, training):
    x = x_ref[...]

    # Layer 1
    w1 = w1_ref[...].astype(jnp.float32)
    h1 = jnp.dot(x, w1, preferred_element_type=jnp.float32) + b1_ref[...]
    h1 = jnp.maximum(h1, 0.0)
    h1 = h1 + n1_ref[...]                       # H1 += normal(0, 0.01)
    if training:
        h1 = h1 * m1_ref[...]                   # mask already scaled by 1/(1-p)

    # Layer 2
    w2 = w2_ref[...].astype(jnp.float32)
    h2 = jnp.dot(h1, w2, preferred_element_type=jnp.float32) + b2_ref[...]
    h2 = jnp.maximum(h2, 0.0)
    h2 = h2 + n2_ref[...]                       # H2 += normal(0, 0.01)
    if training:
        h2 = h2 * m2_ref[...]

    # Layer 3 (no activation), lane-dense padded output
    w3 = w3_ref[...].astype(jnp.float32)
    out = jnp.dot(h2, w3, preferred_element_type=jnp.float32) + b3_ref[...]
    o_ref[...] = out.astype(o_ref.dtype)


def _scaled_dropout_mask(key, shape, p):
    """(rand > p).float() / (1 - p), matching dropout_layer()."""
    if p <= 0.0:
        return jnp.ones(shape, jnp.float32)
    if p >= 1.0:
        return jnp.zeros(shape, jnp.float32)
    keep = (jax.random.uniform(key, shape, jnp.float32) > p).astype(jnp.float32)
    return keep * (1.0 / (1.0 - p))


def net_forward(x, params, key, *, training=IS_TRAINING):
    """Pallas equivalent of Net.forward. x: any shape with prod(tail)==NUM_INPUTS."""
    w1, b1, w2, b2, w3p, b3p = params
    x2d = x.reshape((-1, NUM_INPUTS)).astype(jnp.float32)
    batch = x2d.shape[0]

    # Batch tile: multiple of 8 sublanes; pad batch up to a whole number of tiles.
    block_rows = min(MAX_BLOCK_ROWS, _round_up(batch, 8))
    padded = _round_up(batch, block_rows)
    if padded != batch:
        x2d = jnp.pad(x2d, ((0, padded - batch), (0, 0)))

    # Randomness generated host-side (fused into the kernel as inputs).
    kn1, kn2, km1, km2 = jax.random.split(key, 4)
    n1 = NOISE_STD * jax.random.normal(kn1, (padded, NUM_HIDDENS1), jnp.float32)
    n2 = NOISE_STD * jax.random.normal(kn2, (padded, NUM_HIDDENS2), jnp.float32)
    if training:
        m1 = _scaled_dropout_mask(km1, (padded, NUM_HIDDENS1), DROPOUT1)
        m2 = _scaled_dropout_mask(km2, (padded, NUM_HIDDENS2), DROPOUT2)
    else:  # unused by the kernel (training is a static flag), but keep shapes fixed
        m1 = jnp.ones((padded, NUM_HIDDENS1), jnp.float32)
        m2 = jnp.ones((padded, NUM_HIDDENS2), jnp.float32)

    grid = (padded // block_rows,)

    def row_spec(cols):          # batch-tiled arrays
        return pl.BlockSpec((block_rows, cols), lambda i: (i, 0))

    def resident_spec(r, c):     # weights / biases: same block every grid step
        return pl.BlockSpec((r, c), lambda i: (0, 0))

    flops = 2 * padded * (NUM_INPUTS * NUM_HIDDENS1
                          + NUM_HIDDENS1 * NUM_HIDDENS2
                          + NUM_HIDDENS2 * OUT_PAD)
    bytes_accessed = (
        (x2d.size + n1.size + n2.size + m1.size + m2.size) * 4
        + (w1.size + w2.size + w3p.size) * 2                     # bf16 weights
        + (b1.size + b2.size + b3p.size) * 4
        + padded * OUT_PAD * 4)

    kernel = functools.partial(mlp_kernel, training=training)
    out_padded = pl.pallas_call(
        kernel,
        out_shape=jax.ShapeDtypeStruct((padded, OUT_PAD), jnp.float32),
        grid=grid,
        in_specs=[
            row_spec(NUM_INPUTS),                        # x
            resident_spec(NUM_INPUTS, NUM_HIDDENS1),     # w1 (bf16)
            resident_spec(1, NUM_HIDDENS1),              # b1
            resident_spec(NUM_HIDDENS1, NUM_HIDDENS2),   # w2 (bf16)
            resident_spec(1, NUM_HIDDENS2),              # b2
            resident_spec(NUM_HIDDENS2, OUT_PAD),        # w3 (bf16, padded)
            resident_spec(1, OUT_PAD),                   # b3 (padded)
            row_spec(NUM_HIDDENS1),                      # noise1
            row_spec(NUM_HIDDENS2),                      # noise2
            row_spec(NUM_HIDDENS1),                      # scaled mask1
            row_spec(NUM_HIDDENS2),                      # scaled mask2
        ],
        out_specs=row_spec(OUT_PAD),
        compiler_params=pltpu.CompilerParams(
            dimension_semantics=("parallel",)),
        cost_estimate=pl.CostEstimate(
            flops=flops, transcendentals=0, bytes_accessed=bytes_accessed),
    )(x2d, w1, b1, w2, b2, w3p, b3p, n1, n2, m1, m2)

    return out_padded[:batch, :NUM_OUTPUTS]


def init_params(key):
    """Deterministic init mirroring nn.Linear's U(-1/sqrt(fan_in), 1/sqrt(fan_in))."""
    def linear(k, fan_in, fan_out):
        kw, kb = jax.random.split(k)
        bound = 1.0 / (fan_in ** 0.5)
        w = jax.random.uniform(kw, (fan_in, fan_out), jnp.float32, -bound, bound)
        b = jax.random.uniform(kb, (1, fan_out), jnp.float32, -bound, bound)
        return w, b

    k1, k2, k3 = jax.random.split(key, 3)
    w1, b1 = linear(k1, NUM_INPUTS, NUM_HIDDENS1)
    w2, b2 = linear(k2, NUM_HIDDENS1, NUM_HIDDENS2)
    w3, b3 = linear(k3, NUM_HIDDENS2, NUM_OUTPUTS)

    # Zero-pad the final layer to a lane-dense 128-wide output.
    w3p = jnp.zeros((NUM_HIDDENS2, OUT_PAD), jnp.float32).at[:, :NUM_OUTPUTS].set(w3)
    b3p = jnp.zeros((1, OUT_PAD), jnp.float32).at[:, :NUM_OUTPUTS].set(b3)

    return (w1.astype(jnp.bfloat16), b1,
            w2.astype(jnp.bfloat16), b2,
            w3p.astype(jnp.bfloat16), b3p)


if __name__ == "__main__":
    key = jax.random.PRNGKey(0)
    kx, kp, kr = jax.random.split(key, 3)

    # NCHW-style input, flattened inside net_forward (X.reshape((-1, num_inputs))).
    x = jax.random.normal(kx, (BATCH, C, H, W), dtype=jnp.float32)
    params = init_params(kp)

    out = net_forward(x, params, kr, training=IS_TRAINING)
    out = jax.block_until_ready(out)

    assert out.shape == (BATCH, NUM_OUTPUTS)
    assert bool(jnp.all(jnp.isfinite(out)))
    print("KERNEL_OK")
</pallas_src>

<mosaic_0001>
module attributes {stable_mosaic.version = 11 : i64} {
  func.func @mlp_kernel(%arg0: i32, %arg1: memref<8x256xf32, #tpu.memory_space<vmem>>, %arg2: memref<256x256xbf16, #tpu.memory_space<vmem>>, %arg3: memref<1x256xf32, #tpu.memory_space<vmem>>, %arg4: memref<256x128xbf16, #tpu.memory_space<vmem>>, %arg5: memref<1x128xf32, #tpu.memory_space<vmem>>, %arg6: memref<128x128xbf16, #tpu.memory_space<vmem>>, %arg7: memref<1x128xf32, #tpu.memory_space<vmem>>, %arg8: memref<8x256xf32, #tpu.memory_space<vmem>>, %arg9: memref<8x128xf32, #tpu.memory_space<vmem>>, %arg10: memref<8x256xf32, #tpu.memory_space<vmem>>, %arg11: memref<8x128xf32, #tpu.memory_space<vmem>>, %arg12: memref<8x128xf32, #tpu.memory_space<vmem>>) attributes {dimension_semantics = [#tpu.dimension_semantics<parallel>], iteration_bounds = array<i64: 1>, scalar_prefetch = 0 : i64, scratch_operands = 0 : i64, tpu.core_type = #tpu.core_type<tc>, window_params = [{transform_indices = @transform_0, window_bounds = array<i64: 8, 256>}, {pipeline_mode = #tpu.pipeline_mode<synchronous>, transform_indices = @transform_1, window_bounds = array<i64: 256, 256>}, {pipeline_mode = #tpu.pipeline_mode<synchronous>, transform_indices = @transform_2, window_bounds = array<i64: 1, 256>}, {pipeline_mode = #tpu.pipeline_mode<synchronous>, transform_indices = @transform_3, window_bounds = array<i64: 256, 128>}, {pipeline_mode = #tpu.pipeline_mode<synchronous>, transform_indices = @transform_4, window_bounds = array<i64: 1, 128>}, {pipeline_mode = #tpu.pipeline_mode<synchronous>, transform_indices = @transform_5, window_bounds = array<i64: 128, 128>}, {pipeline_mode = #tpu.pipeline_mode<synchronous>, transform_indices = @transform_6, window_bounds = array<i64: 1, 128>}, {transform_indices = @transform_7, window_bounds = array<i64: 8, 256>}, {transform_indices = @transform_8, window_bounds = array<i64: 8, 128>}, {transform_indices = @transform_9, window_bounds = array<i64: 8, 256>}, {transform_indices = @transform_10, window_bounds = array<i64: 8, 128>}, {transform_indices = @transform_11, window_bounds = array<i64: 8, 128>}]} {
    %c0 = arith.constant 0 : index
    %c0_0 = arith.constant 0 : index
    %0 = vector.load %arg1[%c0, %c0_0] : memref<8x256xf32, #tpu.memory_space<vmem>>, vector<8x256xf32>
    %c0_1 = arith.constant 0 : index
    %c0_2 = arith.constant 0 : index
    %1 = vector.load %arg2[%c0_1, %c0_2] : memref<256x256xbf16, #tpu.memory_space<vmem>>, vector<256x256xbf16>
    %2 = arith.extf %1 : vector<256x256xbf16> to vector<256x256xf32>
    %cst = arith.constant dense<0.000000e+00> : vector<8x256xf32>
    %3 = tpu.matmul %0, %2, %cst {dimension_numbers = #tpu.dot_dimension_numbers<[1], [0], [0], [1], [0, 0, 1, 1], [], []>} : vector<8x256xf32>, vector<256x256xf32>, vector<8x256xf32> -> vector<8x256xf32>
    %c0_3 = arith.constant 0 : index
    %c0_4 = arith.constant 0 : index
    %4 = vector.load %arg3[%c0_3, %c0_4] : memref<1x256xf32, #tpu.memory_space<vmem>>, vector<1x256xf32>
    %5 = vector.broadcast %4 : vector<1x256xf32> to vector<8x256xf32>
    %6 = arith.addf %3, %5 : vector<8x256xf32>
    %cst_5 = arith.constant 0.000000e+00 : f32
    %7 = vector.broadcast %cst_5 : f32 to vector<8x256xf32>
    %8 = arith.maximumf %6, %7 : vector<8x256xf32>
    %c0_6 = arith.constant 0 : index
    %c0_7 = arith.constant 0 : index
    %9 = vector.load %arg8[%c0_6, %c0_7] : memref<8x256xf32, #tpu.memory_space<vmem>>, vector<8x256xf32>
    %10 = arith.addf %8, %9 : vector<8x256xf32>
    %c0_8 = arith.constant 0 : index
    %c0_9 = arith.constant 0 : index
    %11 = vector.load %arg10[%c0_8, %c0_9] : memref<8x256xf32, #tpu.memory_space<vmem>>, vector<8x256xf32>
    %12 = arith.mulf %10, %11 : vector<8x256xf32>
    %c0_10 = arith.constant 0 : index
    %c0_11 = arith.constant 0 : index
    %13 = vector.load %arg4[%c0_10, %c0_11] : memref<256x128xbf16, #tpu.memory_space<vmem>>, vector<256x128xbf16>
    %14 = arith.extf %13 : vector<256x128xbf16> to vector<256x128xf32>
    %cst_12 = arith.constant dense<0.000000e+00> : vector<8x128xf32>
    %15 = tpu.matmul %12, %14, %cst_12 {dimension_numbers = #tpu.dot_dimension_numbers<[1], [0], [0], [1], [0, 0, 1, 1], [], []>} : vector<8x256xf32>, vector<256x128xf32>, vector<8x128xf32> -> vector<8x128xf32>
    %c0_13 = arith.constant 0 : index
    %c0_14 = arith.constant 0 : index
    %16 = vector.load %arg5[%c0_13, %c0_14] : memref<1x128xf32, #tpu.memory_space<vmem>>, vector<1x128xf32>
    %17 = vector.broadcast %16 : vector<1x128xf32> to vector<8x128xf32>
    %18 = arith.addf %15, %17 : vector<8x128xf32>
    %cst_15 = arith.constant 0.000000e+00 : f32
    %19 = vector.broadcast %cst_15 : f32 to vector<8x128xf32>
    %20 = arith.maximumf %18, %19 : vector<8x128xf32>
    %c0_16 = arith.constant 0 : index
    %c0_17 = arith.constant 0 : index
    %21 = vector.load %arg9[%c0_16, %c0_17] : memref<8x128xf32, #tpu.memory_space<vmem>>, vector<8x128xf32>
    %22 = arith.addf %20, %21 : vector<8x128xf32>
    %c0_18 = arith.constant 0 : index
    %c0_19 = arith.constant 0 : index
    %23 = vector.load %arg11[%c0_18, %c0_19] : memref<8x128xf32, #tpu.memory_space<vmem>>, vector<8x128xf32>
    %24 = arith.mulf %22, %23 : vector<8x128xf32>
    %c0_20 = arith.constant 0 : index
    %c0_21 = arith.constant 0 : index
    %25 = vector.load %arg6[%c0_20, %c0_21] : memref<128x128xbf16, #tpu.memory_space<vmem>>, vector<128x128xbf16>
    %26 = arith.extf %25 : vector<128x128xbf16> to vector<128x128xf32>
    %cst_22 = arith.constant dense<0.000000e+00> : vector<8x128xf32>
    %27 = tpu.matmul %24, %26, %cst_22 {dimension_numbers = #tpu.dot_dimension_numbers<[1], [0], [0], [1], [0, 0, 1, 1], [], []>} : vector<8x128xf32>, vector<128x128xf32>, vector<8x128xf32> -> vector<8x128xf32>
    %c0_23 = arith.constant 0 : index
    %c0_24 = arith.constant 0 : index
    %28 = vector.load %arg7[%c0_23, %c0_24] : memref<1x128xf32, #tpu.memory_space<vmem>>, vector<1x128xf32>
    %29 = vector.broadcast %28 : vector<1x128xf32> to vector<8x128xf32>
    %30 = arith.addf %27, %29 : vector<8x128xf32>
    %c0_25 = arith.constant 0 : index
    %c0_26 = arith.constant 0 : index
    %31 = vector.load %arg12[%c0_25, %c0_26] : memref<8x128xf32, #tpu.memory_space<vmem>>, vector<8x128xf32>
    tpu.vector_store %arg12[%c0_25, %c0_26], %30 {strides = array<i32>} : memref<8x128xf32, #tpu.memory_space<vmem>>, vector<8x128xf32>,
    return
  }
  func.func @transform_0(%arg0: i32) -> (i32, i32) {
    %c0_i32 = arith.constant 0 : i32
    %c0_i32_0 = arith.constant 0 : i32
    return %arg0, %c0_i32 : i32, i32
  }
  func.func @transform_1(%arg0: i32) -> (i32, i32) {
    %c0_i32 = arith.constant 0 : i32
    %c0_i32_0 = arith.constant 0 : i32
    %c0_i32_1 = arith.constant 0 : i32
    return %c0_i32, %c0_i32_0 : i32, i32
  }
  func.func @transform_2(%arg0: i32) -> (i32, i32) {
    %c0_i32 = arith.constant 0 : i32
    %c0_i32_0 = arith.constant 0 : i32
    %c0_i32_1 = arith.constant 0 : i32
    return %c0_i32, %c0_i32_0 : i32, i32
  }
  func.func @transform_3(%arg0: i32) -> (i32, i32) {
    %c0_i32 = arith.constant 0 : i32
    %c0_i32_0 = arith.constant 0 : i32
    %c0_i32_1 = arith.constant 0 : i32
    return %c0_i32, %c0_i32_0 : i32, i32
  }
  func.func @transform_4(%arg0: i32) -> (i32, i32) {
    %c0_i32 = arith.constant 0 : i32
    %c0_i32_0 = arith.constant 0 : i32
    %c0_i32_1 = arith.constant 0 : i32
    return %c0_i32, %c0_i32_0 : i32, i32
  }
  func.func @transform_5(%arg0: i32) -> (i32, i32) {
    %c0_i32 = arith.constant 0 : i32
    %c0_i32_0 = arith.constant 0 : i32
    %c0_i32_1 = arith.constant 0 : i32
    return %c0_i32, %c0_i32_0 : i32, i32
  }
  func.func @transform_6(%arg0: i32) -> (i32, i32) {
    %c0_i32 = arith.constant 0 : i32
    %c0_i32_0 = arith.constant 0 : i32
    %c0_i32_1 = arith.constant 0 : i32
    return %c0_i32, %c0_i32_0 : i32, i32
  }
  func.func @transform_7(%arg0: i32) -> (i32, i32) {
    %c0_i32 = arith.constant 0 : i32
    %c0_i32_0 = arith.constant 0 : i32
    return %arg0, %c0_i32 : i32, i32
  }
  func.func @transform_8(%arg0: i32) -> (i32, i32) {
    %c0_i32 = arith.constant 0 : i32
    %c0_i32_0 = arith.constant 0 : i32
    return %arg0, %c0_i32 : i32, i32
  }
  func.func @transform_9(%arg0: i32) -> (i32, i32) {
    %c0_i32 = arith.constant 0 : i32
    %c0_i32_0 = arith.constant 0 : i32
    return %arg0, %c0_i32 : i32, i32
  }
  func.func @transform_10(%arg0: i32) -> (i32, i32) {
    %c0_i32 = arith.constant 0 : i32
    %c0_i32_0 = arith.constant 0 : i32
    return %arg0, %c0_i32 : i32, i32
  }
  func.func @transform_11(%arg0: i32) -> (i32, i32) {
    %c0_i32 = arith.constant 0 : i32
    %c0_i32_0 = arith.constant 0 : i32
    return %arg0, %c0_i32 : i32, i32
  }
}

</mosaic_0001>

<llo_original>
// kernel: tpu_custom_call.1
$region0: #{tpu_custom_call.1}
  #allocation0 [shape = 'u32[]', space=smem, size = 0x4, offset = 0x4, fixed_abs, tag = 'smem constant byte address 0x4 - core index']
  #allocation1 [shape = 'u32[72,128]{1,0:T(1,128)}', space=vmem, size = 0x9000, scoped, tag = 'internal scratch']
  %s0 = inlined_call_operand.hbm [shape: f32[8,256], index: 0, kind: input, shape index: {}]
  %s1 = inlined_call_operand.hbm [shape: bf16[256,256], index: 1, kind: input, shape index: {}]
  %s2 = inlined_call_operand.hbm [shape: f32[1,256], index: 2, kind: input, shape index: {}]
  %s3 = inlined_call_operand.hbm [shape: bf16[256,128], index: 3, kind: input, shape index: {}]
  %s4 = inlined_call_operand.vmem [shape: f32[1,128], index: 4, kind: input, shape index: {}]
  %s5 = inlined_call_operand.hbm [shape: bf16[128,128], index: 5, kind: input, shape index: {}]
  %s6 = inlined_call_operand.hbm [shape: f32[1,128], index: 6, kind: input, shape index: {}]
  %s7 = inlined_call_operand.hbm [shape: f32[8,256], index: 7, kind: input, shape index: {}]
  %s8 = inlined_call_operand.hbm [shape: f32[8,128], index: 8, kind: input, shape index: {}]
  %s9 = inlined_call_operand.hbm [shape: f32[8,256], index: 9, kind: input, shape index: {}]
  %s10 = inlined_call_operand.vmem [shape: f32[8,128], index: 10, kind: input, shape index: {}]
  %s11 = inlined_call_operand.hbm [shape: f32[8,128], index: 11, kind: output, shape index: {}]
  %s12 = sld [smem:[#allocation0]]
  $region90: #{tpu_custom_call.1} parent=0
    _
  %s14 = ssub.s32 1, %s12
  %s15 = scalar_select 0, %s14, %s12
  $region1: #{tpu_custom_call.1} parent=0
    #allocation2 [shape = 'u8[8192]{0}', space=vmem, size = 0x2000, scoped, tag = 'input window, operand 0, single buffered']
    #allocation3 [shape = 's32[1]{0}', space=sflag, size = 0x4, scoped, tag = 'scoped memory for tpu_custom_call.1']
    #allocation4 [shape = 's32[1]{0}', space=sflag, size = 0x4, scoped, tag = 'scoped memory for tpu_custom_call.1']
    #allocation5 [shape = 'u8[131072]{0}', space=vmem, size = 0x20000, scoped, tag = 'input window, operand 1, single buffered']
    #allocation6 [shape = 's32[1]{0}', space=sflag, size = 0x4, scoped, tag = 'scoped memory for tpu_custom_call.1']
    #allocation7 [shape = 'u8[1024]{0}', space=vmem, size = 0x400, scoped, tag = 'input window, operand 2, single buffered']
    #allocation8 [shape = 'u8[65536]{0}', space=vmem, size = 0x10000, scoped, tag = 'input window, operand 3, single buffered']
    #allocation9 [shape = 's32[1]{0}', space=sflag, size = 0x4, scoped, tag = 'scoped memory for tpu_custom_call.1']
    #allocation10 [shape = 'u8[32768]{0}', space=vmem, size = 0x8000, scoped, tag = 'input window, operand 5, single buffered']
    #allocation11 [shape = 'u8[512]{0}', space=vmem, size = 0x400, scoped, tag = 'input window, operand 6, single buffered']
    #allocation12 [shape = 's32[1]{0}', space=sflag, size = 0x4, scoped, tag = 'scoped memory for tpu_custom_call.1']
    #allocation13 [shape = 'u8[8192]{0}', space=vmem, size = 0x2000, scoped, tag = 'input window, operand 7, single buffered']
    #allocation14 [shape = 'u8[4096]{0}', space=vmem, size = 0x1000, scoped, tag = 'input window, operand 8, single buffered']
    #allocation15 [shape = 's32[1]{0}', space=sflag, size = 0x4, scoped, tag = 'scoped memory for tpu_custom_call.1']
    #allocation16 [shape = 'u8[8192]{0}', space=vmem, size = 0x2000, scoped, tag = 'input window, operand 9, single buffered']
    #allocation17 [shape = 'u8[4096]{0}', space=vmem, size = 0x1000, scoped, tag = 'output window, operand 0, single buffered']
    %16 = vsyncpa [#allocation3], 0
    %17 = vsyncpa [#allocation6], 0
    %18 = vsyncpa [#allocation9], 0
    %19 = vsyncpa [#allocation12], 0
    %20 = vsyncpa [#allocation15], 0
    %21 = vsyncpa [#allocation4], 0
    // Predicated region
    $region2: #{tpu_custom_call.1} parent=1 // pred_check
      _
    $region3: #{tpu_custom_call.1} parent=1 // pred_check_branch
      %23 = sbr.rel (0) target = $region5
    $region4: #{tpu_custom_call.1} parent=1 // pred_region
      %25 = vsyncadd [#allocation3], 0
      %s27 = sshll.u32 %s0, 4
      %s28 = int_to_ptr.hbm [resolvable:$true] %s27
      %s29 = sshll.u32 [#allocation2], 4
      %s30 = int_to_ptr.vmem [resolvable:$true] %s29
      %32 = dma.hbm_to_vmem [thread:$0]  %s28, 256, %s30, [#allocation3]
    $region5: #{tpu_custom_call.1} parent=1 // pred_fallthru
      _
    // Predicated region
    $region6: #{tpu_custom_call.1} parent=1 // pred_check
      _
    $region7: #{tpu_custom_call.1} parent=1 // pred_check_branch
      %34 = sbr.rel (0) target = $region9
    $region8: #{tpu_custom_call.1} parent=1 // pred_region
      %36 = vsyncadd [#allocation6], 0
      %s37 = sshll.u32 %s1, 4
      %s38 = int_to_ptr.hbm [resolvable:$true] %s37
      %s39 = sshll.u32 [#allocation5], 4
      %s40 = int_to_ptr.vmem [resolvable:$true] %s39
      %45 = dma.hbm_to_vmem [thread:$0]  %s38, 4096, %s40, [#allocation6], 128, 128, 8
    $region9: #{tpu_custom_call.1} parent=1 // pred_fallthru
      _
    // Predicated region
    $region10: #{tpu_custom_call.1} parent=1 // pred_check
      _
    $region11: #{tpu_custom_call.1} parent=1 // pred_check_branch
      %47 = sbr.rel (0) target = $region13
    $region12: #{tpu_custom_call.1} parent=1 // pred_region
      %49 = vsyncadd [#allocation6], 0
      %s51 = sshll.u32 %s2, 4
      %s52 = int_to_ptr.hbm [resolvable:$true] %s51
      %s53 = sshll.u32 [#allocation7], 4
      %s54 = int_to_ptr.vmem [resolvable:$true] %s53
      %56 = dma.hbm_to_vmem [thread:$0]  %s52, 32, %s54, [#allocation6]
    $region13: #{tpu_custom_call.1} parent=1 // pred_fallthru
      _
    // Predicated region
    $region14: #{tpu_custom_call.1} parent=1 // pred_check
      _
    $region15: #{tpu_custom_call.1} parent=1 // pred_check_branch
      %58 = sbr.rel (0) target = $region17
    $region16: #{tpu_custom_call.1} parent=1 // pred_region
      %60 = vsyncadd [#allocation9], 0
      %s61 = sshll.u32 %s3, 4
      %s62 = int_to_ptr.hbm [resolvable:$true] %s61
      %s63 = sshll.u32 [#allocation8], 4
      %s64 = int_to_ptr.vmem [resolvable:$true] %s63
      %69 = dma.hbm_to_vmem [thread:$0]  %s62, 2048, %s64, [#allocation9], 64, 64, 4
    $region17: #{tpu_custom_call.1} parent=1 // pred_fallthru
      _
    // Predicated region
    $region18: #{tpu_custom_call.1} parent=1 // pred_check
      _
    $region19: #{tpu_custom_call.1} parent=1 // pred_check_branch
      %71 = sbr.rel (0) target = $region21
    $region20: #{tpu_custom_call.1} parent=1 // pred_region
      _
    $region21: #{tpu_custom_call.1} parent=1 // pred_fallthru
      _
    // Predicated region
    $region22: #{tpu_custom_call.1} parent=1 // pred_check
      _
    $region23: #{tpu_custom_call.1} parent=1 // pred_check_branch
      %73 = sbr.rel (0) target = $region25
    $region24: #{tpu_custom_call.1} parent=1 // pred_region
      %75 = vsyncadd [#allocation9], 0
      %s76 = sshll.u32 %s5, 4
      %s77 = int_to_ptr.hbm [resolvable:$true] %s76
      %s78 = sshll.u32 [#allocation10], 4
      %s79 = int_to_ptr.vmem [resolvable:$true] %s78
      %84 = dma.hbm_to_vmem [thread:$0]  %s77, 1024, %s79, [#allocation9], 64, 64, 4
    $region25: #{tpu_custom_call.1} parent=1 // pred_fallthru
      _
    // Predicated region
    $region26: #{tpu_custom_call.1} parent=1 // pred_check
      _
    $region27: #{tpu_custom_call.1} parent=1 // pred_check_branch
      %86 = sbr.rel (0) target = $region29
    $region28: #{tpu_custom_call.1} parent=1 // pred_region
      %88 = vsyncadd [#allocation12], 0
      %s90 = sshll.u32 %s6, 4
      %s91 = int_to_ptr.hbm [resolvable:$true] %s90
      %s92 = sshll.u32 [#allocation11], 4
      %s93 = int_to_ptr.vmem [resolvable:$true] %s92
      %95 = dma.hbm_to_vmem [thread:$0]  %s91, 16, %s93, [#allocation12]
    $region29: #{tpu_custom_call.1} parent=1 // pred_fallthru
      _
    // Predicated region
    $region30: #{tpu_custom_call.1} parent=1 // pred_check
      _
    $region31: #{tpu_custom_call.1} parent=1 // pred_check_branch
      %97 = sbr.rel (0) target = $region33
    $region32: #{tpu_custom_call.1} parent=1 // pred_region
      %99 = vsyncadd [#allocation12], 0
      %s101 = sshll.u32 %s7, 4
      %s102 = int_to_ptr.hbm [resolvable:$true] %s101
      %s103 = sshll.u32 [#allocation13], 4
      %s104 = int_to_ptr.vmem [resolvable:$true] %s103
      %106 = dma.hbm_to_vmem [thread:$0]  %s102, 256, %s104, [#allocation12]
    $region33: #{tpu_custom_call.1} parent=1 // pred_fallthru
      _
    // Predicated region
    $region34: #{tpu_custom_call.1} parent=1 // pred_check
      _
    $region35: #{tpu_custom_call.1} parent=1 // pred_check_branch
      %108 = sbr.rel (0) target = $region37
    $region36: #{tpu_custom_call.1} parent=1 // pred_region
      %110 = vsyncadd [#allocation15], 0
      %s112 = sshll.u32 %s8, 4
      %s113 = int_to_ptr.hbm [resolvable:$true] %s112
      %s114 = sshll.u32 [#allocation14], 4
      %s115 = int_to_ptr.vmem [resolvable:$true] %s114
      %117 = dma.hbm_to_vmem [thread:$0]  %s113, 128, %s115, [#allocation15]
    $region37: #{tpu_custom_call.1} parent=1 // pred_fallthru
      _
    // Predicated region
    $region38: #{tpu_custom_call.1} parent=1 // pred_check
      _
    $region39: #{tpu_custom_call.1} parent=1 // pred_check_branch
      %119 = sbr.rel (0) target = $region41
    $region40: #{tpu_custom_call.1} parent=1 // pred_region
      %121 = vsyncadd [#allocation15], 0
      %s123 = sshll.u32 %s9, 4
      %s124 = int_to_ptr.hbm [resolvable:$true] %s123
      %s125 = sshll.u32 [#allocation16], 4
      %s126 = int_to_ptr.vmem [resolvable:$true] %s125
      %128 = dma.hbm_to_vmem [thread:$0]  %s124, 256, %s126, [#allocation15]
    $region41: #{tpu_custom_call.1} parent=1 // pred_fallthru
      _
    // Predicated region
    $region42: #{tpu_custom_call.1} parent=1 // pred_check
      _
    $region43: #{tpu_custom_call.1} parent=1 // pred_check_branch
      %130 = sbr.rel (0) target = $region45
    $region44: #{tpu_custom_call.1} parent=1 // pred_region
      _
    $region45: #{tpu_custom_call.1} parent=1 // pred_fallthru
      _
    // Predicated region
    $region46: #{tpu_custom_call.1} parent=1 // pred_check
      _
    $region47: #{tpu_custom_call.1} parent=1 // pred_check_branch
      %132 = sbr.rel (0) target = $region49
    $region48: #{tpu_custom_call.1} parent=1 // pred_region
      %134 = dma.done [#allocation3], 256
    $region49: #{tpu_custom_call.1} parent=1 // pred_fallthru
      _
    // Predicated region
    $region50: #{tpu_custom_call.1} parent=1 // pred_check
      _
    $region51: #{tpu_custom_call.1} parent=1 // pred_check_branch
      %136 = sbr.rel (0) target = $region53
    $region52: #{tpu_custom_call.1} parent=1 // pred_region
      %138 = dma.done [#allocation6], 4096
    $region53: #{tpu_custom_call.1} parent=1 // pred_fallthru
      _
    // Predicated region
    $region54: #{tpu_custom_call.1} parent=1 // pred_check
      _
    $region55: #{tpu_custom_call.1} parent=1 // pred_check_branch
      %140 = sbr.rel (0) target = $region57
    $region56: #{tpu_custom_call.1} parent=1 // pred_region
      %142 = dma.done [#allocation6], 32
    $region57: #{tpu_custom_call.1} parent=1 // pred_fallthru
      _
    // Predicated region
    $region58: #{tpu_custom_call.1} parent=1 // pred_check
      _
    $region59: #{tpu_custom_call.1} parent=1 // pred_check_branch
      %144 = sbr.rel (0) target = $region61
    $region60: #{tpu_custom_call.1} parent=1 // pred_region
      %146 = dma.done [#allocation9], 2048
    $region61: #{tpu_custom_call.1} parent=1 // pred_fallthru
      _
    // Predicated region
    $region62: #{tpu_custom_call.1} parent=1 // pred_check
      _
    $region63: #{tpu_custom_call.1} parent=1 // pred_check_branch
      %148 = sbr.rel (0) target = $region65
    $region64: #{tpu_custom_call.1} parent=1 // pred_region
      %150 = dma.done [#allocation9], 1024
    $region65: #{tpu_custom_call.1} parent=1 // pred_fallthru
      _
    // Predicated region
    $region66: #{tpu_custom_call.1} parent=1 // pred_check
      _
    $region67: #{tpu_custom_call.1} parent=1 // pred_check_branch
      %152 = sbr.rel (0) target = $region69
    $region68: #{tpu_custom_call.1} parent=1 // pred_region
      %154 = dma.done [#allocation12], 16
    $region69: #{tpu_custom_call.1} parent=1 // pred_fallthru
      _
    // Predicated region
    $region70: #{tpu_custom_call.1} parent=1 // pred_check
      _
    $region71: #{tpu_custom_call.1} parent=1 // pred_check_branch
      %156 = sbr.rel (0) target = $region73
    $region72: #{tpu_custom_call.1} parent=1 // pred_region
      %158 = dma.done [#allocation12], 256
    $region73: #{tpu_custom_call.1} parent=1 // pred_fallthru
      _
    // Predicated region
    $region74: #{tpu_custom_call.1} parent=1 // pred_check
      _
    $region75: #{tpu_custom_call.1} parent=1 // pred_check_branch
      %160 = sbr.rel (0) target = $region77
    $region76: #{tpu_custom_call.1} parent=1 // pred_region
      %162 = dma.done [#allocation15], 128
    $region77: #{tpu_custom_call.1} parent=1 // pred_fallthru
      _
    // Predicated region
    $region78: #{tpu_custom_call.1} parent=1 // pred_check
      _
    $region79: #{tpu_custom_call.1} parent=1 // pred_check_branch
      %164 = sbr.rel (0) target = $region81
    $region80: #{tpu_custom_call.1} parent=1 // pred_region
      %166 = dma.done [#allocation15], 256
    $region81: #{tpu_custom_call.1} parent=1 // pred_fallthru
      _
    %v167 = vld [vmem:[#allocation2] sm:$0xff]
    %v168 = vld [vmem:[#allocation2 + $0x8] sm:$0xff]
    %v169 = vld [vmem:[#allocation5] sm:$0xff]
    %v170 = vld [vmem:[#allocation5 + $0x8] sm:$0xff]
    %v171 = vld [vmem:[#allocation5 + $0x10] sm:$0xff]
    %v172 = vld [vmem:[#allocation5 + $0x18] sm:$0xff]
    %v173 = vld [vmem:[#allocation5 + $0x20] sm:$0xff]
    %v174 = vld [vmem:[#allocation5 + $0x28] sm:$0xff]
    %v175 = vld [vmem:[#allocation5 + $0x30] sm:$0xff]
    %v176 = vld [vmem:[#allocation5 + $0x38] sm:$0xff]
    %v177 = vld [vmem:[#allocation5 + $0x40] sm:$0xff]
    %v178 = vld [vmem:[#allocation5 + $0x48] sm:$0xff]
    %v179 = vld [vmem:[#allocation5 + $0x50] sm:$0xff]
    %v180 = vld [vmem:[#allocation5 + $0x58] sm:$0xff]
    %v181 = vld [vmem:[#allocation5 + $0x60] sm:$0xff]
    %v182 = vld [vmem:[#allocation5 + $0x68] sm:$0xff]
    %v183 = vld [vmem:[#allocation5 + $0x70] sm:$0xff]
    %v184 = vld [vmem:[#allocation5 + $0x78] sm:$0xff]
    %v185 = vld [vmem:[#allocation5 + $0x80] sm:$0xff]
    %v186 = vld [vmem:[#allocation5 + $0x88] sm:$0xff]
    %v187 = vld [vmem:[#allocation5 + $0x90] sm:$0xff]
    %v188 = vld [vmem:[#allocation5 + $0x98] sm:$0xff]
    %v189 = vld [vmem:[#allocation5 + $0xa0] sm:$0xff]
    %v190 = vld [vmem:[#allocation5 + $0xa8] sm:$0xff]
    %v191 = vld [vmem:[#allocation5 + $0xb0] sm:$0xff]
    %v192 = vld [vmem:[#allocation5 + $0xb8] sm:$0xff]
    %v193 = vld [vmem:[#allocation5 + $0xc0] sm:$0xff]
    %v194 = vld [vmem:[#allocation5 + $0xc8] sm:$0xff]
    %v195 = vld [vmem:[#allocation5 + $0xd0] sm:$0xff]
    %v196 = vld [vmem:[#allocation5 + $0xd8] sm:$0xff]
    %v197 = vld [vmem:[#allocation5 + $0xe0] sm:$0xff]
    %v198 = vld [vmem:[#allocation5 + $0xe8] sm:$0xff]
    %v199 = vld [vmem:[#allocation5 + $0xf0] sm:$0xff]
    %v200 = vld [vmem:[#allocation5 + $0xf8] sm:$0xff]
    %v201 = vunpack.c.l.bf16 %v169
    %v202 = vunpack.c.h.bf16 %v169
    %v203 = vunpack.c.l.bf16 %v170
    %v204 = vunpack.c.h.bf16 %v170
    %v205 = vunpack.c.l.bf16 %v171
    %v206 = vunpack.c.h.bf16 %v171
    %v207 = vunpack.c.l.bf16 %v172
    %v208 = vunpack.c.h.bf16 %v172
    %v209 = vunpack.c.l.bf16 %v173
    %v210 = vunpack.c.h.bf16 %v173
    %v211 = vunpack.c.l.bf16 %v174
    %v212 = vunpack.c.h.bf16 %v174
    %v213 = vunpack.c.l.bf16 %v175
    %v214 = vunpack.c.h.bf16 %v175
    %v215 = vunpack.c.l.bf16 %v176
    %v216 = vunpack.c.h.bf16 %v176
    %v217 = vunpack.c.l.bf16 %v177
    %v218 = vunpack.c.h.bf16 %v177
    %v219 = vunpack.c.l.bf16 %v178
    %v220 = vunpack.c.h.bf16 %v178
    %v221 = vunpack.c.l.bf16 %v179
    %v222 = vunpack.c.h.bf16 %v179
    %v223 = vunpack.c.l.bf16 %v180
    %v224 = vunpack.c.h.bf16 %v180
    %v225 = vunpack.c.l.bf16 %v181
    %v226 = vunpack.c.h.bf16 %v181
    %v227 = vunpack.c.l.bf16 %v182
    %v228 = vunpack.c.h.bf16 %v182
    %v229 = vunpack.c.l.bf16 %v183
    %v230 = vunpack.c.h.bf16 %v183
    %v231 = vunpack.c.l.bf16 %v184
    %v232 = vunpack.c.h.bf16 %v184
    %v233 = vunpack.c.l.bf16 %v185
    %v234 = vunpack.c.h.bf16 %v185
    %v235 = vunpack.c.l.bf16 %v186
    %v236 = vunpack.c.h.bf16 %v186
    %v237 = vunpack.c.l.bf16 %v187
    %v238 = vunpack.c.h.bf16 %v187
    %v239 = vunpack.c.l.bf16 %v188
    %v240 = vunpack.c.h.bf16 %v188
    %v241 = vunpack.c.l.bf16 %v189
    %v242 = vunpack.c.h.bf16 %v189
    %v243 = vunpack.c.l.bf16 %v190
    %v244 = vunpack.c.h.bf16 %v190
    %v245 = vunpack.c.l.bf16 %v191
    %v246 = vunpack.c.h.bf16 %v191
    %v247 = vunpack.c.l.bf16 %v192
    %v248 = vunpack.c.h.bf16 %v192
    %v249 = vunpack.c.l.bf16 %v193
    %v250 = vunpack.c.h.bf16 %v193
    %v251 = vunpack.c.l.bf16 %v194
    %v252 = vunpack.c.h.bf16 %v194
    %v253 = vunpack.c.l.bf16 %v195
    %v254 = vunpack.c.h.bf16 %v195
    %v255 = vunpack.c.l.bf16 %v196
    %v256 = vunpack.c.h.bf16 %v196
    %v257 = vunpack.c.l.bf16 %v197
    %v258 = vunpack.c.h.bf16 %v197
    %v259 = vunpack.c.l.bf16 %v198
    %v260 = vunpack.c.h.bf16 %v198
    %v261 = vunpack.c.l.bf16 %v199
    %v262 = vunpack.c.h.bf16 %v199
    %v263 = vunpack.c.l.bf16 %v200
    %v264 = vunpack.c.h.bf16 %v200
    %v265 = vld [vmem:[#allocation7] sm:$0x3]
    %v267 = vperm.slane %v265, 0
    %v268 = vperm.slane %v265, 1
    %271 = vmatpush.msra.mxu0 %v231
    %272 = vmatpush.msra.mxu0 %v229
    %273 = vmatpush.msra.mxu0 %v227
    %274 = vmatpush.msra.mxu0 %v225
    %275 = vmatpush.msra.mxu0 %v223
    %276 = vmatpush.msra.mxu0 %v221
    %277 = vmatpush.msra.mxu0 %v219
    %278 = vmatpush.msra.mxu0 %v217
    %279 = vmatpush.msra.mxu0 %v215
    %280 = vmatpush.msra.mxu0 %v213
    %281 = vmatpush.msra.mxu0 %v211
    %282 = vmatpush.msra.mxu0 %v209
    %283 = vmatpush.msra.mxu0 %v207
    %284 = vmatpush.msra.mxu0 %v205
    %285 = vmatpush.msra.mxu0 %v203
    %286 = vmatpush.msra.mxu0 %v201
    %287 = vmatmul.f32.gmra.mxu0 %v167
    %v288 = vpop.f32.mrf.mxu0
    %v289 = vadd.f32 %v267, %v288
    %290 = vdwg.mxu0
    %291 = vmatpush.msra.mxu0 %v263
    %292 = vmatpush.msra.mxu0 %v261
    %293 = vmatpush.msra.mxu0 %v259
    %294 = vmatpush.msra.mxu0 %v257
    %295 = vmatpush.msra.mxu0 %v255
    %296 = vmatpush.msra.mxu0 %v253
    %297 = vmatpush.msra.mxu0 %v251
    %298 = vmatpush.msra.mxu0 %v249
    %299 = vmatpush.msra.mxu0 %v247
    %300 = vmatpush.msra.mxu0 %v245
    %301 = vmatpush.msra.mxu0 %v243
    %302 = vmatpush.msra.mxu0 %v241
    %303 = vmatpush.msra.mxu0 %v239
    %304 = vmatpush.msra.mxu0 %v237
    %305 = vmatpush.msra.mxu0 %v235
    %306 = vmatpush.msra.mxu0 %v233
    %307 = vmatmul.f32.gmra.mxu0 %v168
    %v308 = vpop.f32.mrf.mxu0
    %v309 = vadd.f32 %v289, %v308
    %310 = vdwg.mxu0
    %311 = vmatpush.msra.mxu0 %v232
    %312 = vmatpush.msra.mxu0 %v230
    %313 = vmatpush.msra.mxu0 %v228
    %314 = vmatpush.msra.mxu0 %v226
    %315 = vmatpush.msra.mxu0 %v224
    %316 = vmatpush.msra.mxu0 %v222
    %317 = vmatpush.msra.mxu0 %v220
    %318 = vmatpush.msra.mxu0 %v218
    %319 = vmatpush.msra.mxu0 %v216
    %320 = vmatpush.msra.mxu0 %v214
    %321 = vmatpush.msra.mxu0 %v212
    %322 = vmatpush.msra.mxu0 %v210
    %323 = vmatpush.msra.mxu0 %v208
    %324 = vmatpush.msra.mxu0 %v206
    %325 = vmatpush.msra.mxu0 %v204
    %326 = vmatpush.msra.mxu0 %v202
    %327 = vmatmul.f32.gmra.mxu0 %v167
    %v328 = vpop.f32.mrf.mxu0
    %v329 = vadd.f32 %v268, %v328
    %330 = vdwg.mxu0
    %331 = vmatpush.msra.mxu0 %v264
    %332 = vmatpush.msra.mxu0 %v262
    %333 = vmatpush.msra.mxu0 %v260
    %334 = vmatpush.msra.mxu0 %v258
    %335 = vmatpush.msra.mxu0 %v256
    %336 = vmatpush.msra.mxu0 %v254
    %337 = vmatpush.msra.mxu0 %v252
    %338 = vmatpush.msra.mxu0 %v250
    %339 = vmatpush.msra.mxu0 %v248
    %340 = vmatpush.msra.mxu0 %v246
    %341 = vmatpush.msra.mxu0 %v244
    %342 = vmatpush.msra.mxu0 %v242
    %343 = vmatpush.msra.mxu0 %v240
    %344 = vmatpush.msra.mxu0 %v238
    %345 = vmatpush.msra.mxu0 %v236
    %346 = vmatpush.msra.mxu0 %v234
    %347 = vmatmul.f32.gmra.mxu0 %v168
    %v348 = vpop.f32.mrf.mxu0
    %v349 = vadd.f32 %v329, %v348
    %350 = vdwg.mxu0
    %v351 = vmax.f32 %v309, 0.0
    %v352 = vmax.f32 %v349, 0.0
    %v353 = vld [vmem:[#allocation13] sm:$0xff]
    %v354 = vld [vmem:[#allocation13 + $0x8] sm:$0xff]
    %v355 = vadd.f32 %v351, %v353
    %v356 = vadd.f32 %v352, %v354
    %v357 = vld [vmem:[#allocation16] sm:$0xff]
    %v358 = vld [vmem:[#allocation16 + $0x8] sm:$0xff]
    %v359 = vmul.f32 %v355, %v357
    %v360 = vmul.f32 %v356, %v358
    %v361 = vld [vmem:[#allocation8] sm:$0xf]
    %v362 = vld [vmem:[#allocation8 + $0x4] sm:$0xf]
    %v363 = vld [vmem:[#allocation8 + $0x8] sm:$0xf]
    %v364 = vld [vmem:[#allocation8 + $0xc] sm:$0xf]
    %v365 = vld [vmem:[#allocation8 + $0x10] sm:$0xf]
    %v366 = vld [vmem:[#allocation8 + $0x14] sm:$0xf]
    %v367 = vld [vmem:[#allocation8 + $0x18] sm:$0xf]
    %v368 = vld [vmem:[#allocation8 + $0x1c] sm:$0xf]
    %v369 = vld [vmem:[#allocation8 + $0x20] sm:$0xf]
    %v370 = vld [vmem:[#allocation8 + $0x24] sm:$0xf]
    %v371 = vld [vmem:[#allocation8 + $0x28] sm:$0xf]
    %v372 = vld [vmem:[#allocation8 + $0x2c] sm:$0xf]
    %v373 = vld [vmem:[#allocation8 + $0x30] sm:$0xf]
    %v374 = vld [vmem:[#allocation8 + $0x34] sm:$0xf]
    %v375 = vld [vmem:[#allocation8 + $0x38] sm:$0xf]
    %v376 = vld [vmem:[#allocation8 + $0x3c] sm:$0xf]
    %v377 = vld [vmem:[#allocation8 + $0x40] sm:$0xf]
    %v378 = vld [vmem:[#allocation8 + $0x44] sm:$0xf]
    %v379 = vld [vmem:[#allocation8 + $0x48] sm:$0xf]
    %v380 = vld [vmem:[#allocation8 + $0x4c] sm:$0xf]
    %v381 = vld [vmem:[#allocation8 + $0x50] sm:$0xf]
    %v382 = vld [vmem:[#allocation8 + $0x54] sm:$0xf]
    %v383 = vld [vmem:[#allocation8 + $0x58] sm:$0xf]
    %v384 = vld [vmem:[#allocation8 + $0x5c] sm:$0xf]
    %v385 = vld [vmem:[#allocation8 + $0x60] sm:$0xf]
    %v386 = vld [vmem:[#allocation8 + $0x64] sm:$0xf]
    %v387 = vld [vmem:[#allocation8 + $0x68] sm:$0xf]
    %v388 = vld [vmem:[#allocation8 + $0x6c] sm:$0xf]
    %v389 = vld [vmem:[#allocation8 + $0x70] sm:$0xf]
    %v390 = vld [vmem:[#allocation8 + $0x74] sm:$0xf]
    %v391 = vld [vmem:[#allocation8 + $0x78] sm:$0xf]
    %v392 = vld [vmem:[#allocation8 + $0x7c] sm:$0xf]
    %v393 = vunpack.c.l.bf16 %v361
    %v394 = vunpack.c.l.bf16 %v362
    %v395 = vunpack.c.l.bf16 %v363
    %v396 = vunpack.c.l.bf16 %v364
    %v397 = vunpack.c.l.bf16 %v365
    %v398 = vunpack.c.l.bf16 %v366
    %v399 = vunpack.c.l.bf16 %v367
    %v400 = vunpack.c.l.bf16 %v368
    %v401 = vunpack.c.l.bf16 %v369
    %v402 = vunpack.c.l.bf16 %v370
    %v403 = vunpack.c.l.bf16 %v371
    %v404 = vunpack.c.l.bf16 %v372
    %v405 = vunpack.c.l.bf16 %v373
    %v406 = vunpack.c.l.bf16 %v374
    %v407 = vunpack.c.l.bf16 %v375
    %v408 = vunpack.c.l.bf16 %v376
    %v409 = vunpack.c.l.bf16 %v377
    %v410 = vunpack.c.l.bf16 %v378
    %v411 = vunpack.c.l.bf16 %v379
    %v412 = vunpack.c.l.bf16 %v380
    %v413 = vunpack.c.l.bf16 %v381
    %v414 = vunpack.c.l.bf16 %v382
    %v415 = vunpack.c.l.bf16 %v383
    %v416 = vunpack.c.l.bf16 %v384
    %v417 = vunpack.c.l.bf16 %v385
    %v418 = vunpack.c.l.bf16 %v386
    %v419 = vunpack.c.l.bf16 %v387
    %v420 = vunpack.c.l.bf16 %v388
    %v421 = vunpack.c.l.bf16 %v389
    %v422 = vunpack.c.l.bf16 %v390
    %v423 = vunpack.c.l.bf16 %v391
    %v424 = vunpack.c.l.bf16 %v392
    %v425 = vld [vmem:[%s4] sm:$0x1]
    %v427 = vperm.slane %v425, 0
    %429 = vmatpush.msra.mxu0 %v408
    %430 = vmatpush.msra.mxu0 %v407
    %431 = vmatpush.msra.mxu0 %v406
    %432 = vmatpush.msra.mxu0 %v405
    %433 = vmatpush.msra.mxu0 %v404
    %434 = vmatpush.msra.mxu0 %v403
    %435 = vmatpush.msra.mxu0 %v402
    %436 = vmatpush.msra.mxu0 %v401
    %437 = vmatpush.msra.mxu0 %v400
    %438 = vmatpush.msra.mxu0 %v399
    %439 = vmatpush.msra.mxu0 %v398
    %440 = vmatpush.msra.mxu0 %v397
    %441 = vmatpush.msra.mxu0 %v396
    %442 = vmatpush.msra.mxu0 %v395
    %443 = vmatpush.msra.mxu0 %v394
    %444 = vmatpush.msra.mxu0 %v393
    %445 = vmatmul.f32.gmra.mxu0 %v359
    %v446 = vpop.f32.mrf.mxu0
    %v447 = vadd.f32 %v427, %v446
    %448 = vdwg.mxu0
    %449 = vmatpush.msra.mxu0 %v424
    %450 = vmatpush.msra.mxu0 %v423
    %451 = vmatpush.msra.mxu0 %v422
    %452 = vmatpush.msra.mxu0 %v421
    %453 = vmatpush.msra.mxu0 %v420
    %454 = vmatpush.msra.mxu0 %v419
    %455 = vmatpush.msra.mxu0 %v418
    %456 = vmatpush.msra.mxu0 %v417
    %457 = vmatpush.msra.mxu0 %v416
    %458 = vmatpush.msra.mxu0 %v415
    %459 = vmatpush.msra.mxu0 %v414
    %460 = vmatpush.msra.mxu0 %v413
    %461 = vmatpush.msra.mxu0 %v412
    %462 = vmatpush.msra.mxu0 %v411
    %463 = vmatpush.msra.mxu0 %v410
    %464 = vmatpush.msra.mxu0 %v409
    %465 = vmatmul.f32.gmra.mxu0 %v360
    %v466 = vpop.f32.mrf.mxu0
    %v467 = vadd.f32 %v447, %v466
    %468 = vdwg.mxu0
    %v469 = vmax.f32 %v467, 0.0
    %v470 = vld [vmem:[#allocation14] sm:$0xff]
    %v471 = vadd.f32 %v469, %v470
    %v472 = vld [vmem:[%s10] sm:$0xff]
    %v473 = vmul.f32 %v471, %v472
    %v474 = vld [vmem:[#allocation10] sm:$0xf]
    %v475 = vld [vmem:[#allocation10 + $0x4] sm:$0xf]
    %v476 = vld [vmem:[#allocation10 + $0x8] sm:$0xf]
    %v477 = vld [vmem:[#allocation10 + $0xc] sm:$0xf]
    %v478 = vld [vmem:[#allocation10 + $0x10] sm:$0xf]
    %v479 = vld [vmem:[#allocation10 + $0x14] sm:$0xf]
    %v480 = vld [vmem:[#allocation10 + $0x18] sm:$0xf]
    %v481 = vld [vmem:[#allocation10 + $0x1c] sm:$0xf]
    %v482 = vld [vmem:[#allocation10 + $0x20] sm:$0xf]
    %v483 = vld [vmem:[#allocation10 + $0x24] sm:$0xf]
    %v484 = vld [vmem:[#allocation10 + $0x28] sm:$0xf]
    %v485 = vld [vmem:[#allocation10 + $0x2c] sm:$0xf]
    %v486 = vld [vmem:[#allocation10 + $0x30] sm:$0xf]
    %v487 = vld [vmem:[#allocation10 + $0x34] sm:$0xf]
    %v488 = vld [vmem:[#allocation10 + $0x38] sm:$0xf]
    %v489 = vld [vmem:[#allocation10 + $0x3c] sm:$0xf]
    %v490 = vunpack.c.l.bf16 %v474
    %v491 = vunpack.c.l.bf16 %v475
    %v492 = vunpack.c.l.bf16 %v476
    %v493 = vunpack.c.l.bf16 %v477
    %v494 = vunpack.c.l.bf16 %v478
    %v495 = vunpack.c.l.bf16 %v479
    %v496 = vunpack.c.l.bf16 %v480
    %v497 = vunpack.c.l.bf16 %v481
    %v498 = vunpack.c.l.bf16 %v482
    %v499 = vunpack.c.l.bf16 %v483
    %v500 = vunpack.c.l.bf16 %v484
    %v501 = vunpack.c.l.bf16 %v485
    %v502 = vunpack.c.l.bf16 %v486
    %v503 = vunpack.c.l.bf16 %v487
    %v504 = vunpack.c.l.bf16 %v488
    %v505 = vunpack.c.l.bf16 %v489
    %v506 = vld [vmem:[#allocation11] sm:$0x1]
    %v508 = vperm.slane %v506, 0
    %510 = vmatpush.msra.mxu0 %v505
    %511 = vmatpush.msra.mxu0 %v504
    %512 = vmatpush.msra.mxu0 %v503
    %513 = vmatpush.msra.mxu0 %v502
    %514 = vmatpush.msra.mxu0 %v501
    %515 = vmatpush.msra.mxu0 %v500
    %516 = vmatpush.msra.mxu0 %v499
    %517 = vmatpush.msra.mxu0 %v498
    %518 = vmatpush.msra.mxu0 %v497
    %519 = vmatpush.msra.mxu0 %v496
    %520 = vmatpush.msra.mxu0 %v495
    %521 = vmatpush.msra.mxu0 %v494
    %522 = vmatpush.msra.mxu0 %v493
    %523 = vmatpush.msra.mxu0 %v492
    %524 = vmatpush.msra.mxu0 %v491
    %525 = vmatpush.msra.mxu0 %v490
    %526 = vmatmul.f32.gmra.mxu0 %v473
    %v527 = vpop.f32.mrf.mxu0
    %v528 = vadd.f32 %v508, %v527
    %529 = vdwg.mxu0
    %530 = vst [vmem:[#allocation17] sm:$0xff] %v528
    // Predicated region
    $region82: #{tpu_custom_call.1} parent=1 // pred_check
      _
    $region83: #{tpu_custom_call.1} parent=1 // pred_check_branch
      %532 = sbr.rel (0) target = $region85
    $region84: #{tpu_custom_call.1} parent=1 // pred_region
      %534 = vsyncadd [#allocation4], 0
      %s536 = sshll.u32 [#allocation17], 4
      %s537 = int_to_ptr.vmem [resolvable:$true] %s536
      %s538 = sshll.u32 %s11, 4
      %s539 = int_to_ptr.hbm [resolvable:$true] %s538
      %541 = dma.vmem_to_hbm [thread:$0]  %s537, 128, %s539, [#allocation4]
    $region85: #{tpu_custom_call.1} parent=1 // pred_fallthru
      _
    // Predicated region
    $region86: #{tpu_custom_call.1} parent=1 // pred_check
      _
    $region87: #{tpu_custom_call.1} parent=1 // pred_check_branch
      %543 = sbr.rel (0) target = $region89
    $region88: #{tpu_custom_call.1} parent=1 // pred_region
      %545 = dma.done [#allocation4], 128
    $region89: #{tpu_custom_call.1} parent=1 // pred_fallthru
      _
    %546 = vsyncpa [#allocation3], 1
    %547 = vsyncpa [#allocation6], 1
    %548 = vsyncpa [#allocation9], 1
    %549 = vsyncpa [#allocation12], 1
    %550 = vsyncpa [#allocation15], 1
    %551 = vsyncpa [#allocation4], 1

</llo_original>
